<compile_context>
chip_gen: v5e
topology: v5e:2x2
jax: 0.10.0
libtpu: 0.0.40
codegen_flags: <defaults>
</compile_context>

<pallas_src>
import functools

import jax
import jax.numpy as jnp
from jax.experimental import pallas as pl
from jax.experimental.pallas import tpu as pltpu


def _crop_concat_kernel(x_ref, c_ref, o_ref, *, c1, c2, top, left, oh, ow):
    # x_ref : (bt, C1, H, W)    -- already at the target spatial size
    # c_ref : (bt, C2, H2, W2)  -- full (uncropped) spatial extent
    # o_ref : (bt, C1 + C2, H, W)
    # Pure data movement: copy x, then the statically center-cropped window of
    # copy_tensor, casting to the output dtype on the fly.
    o_ref[:, 0:c1, :, :] = x_ref[...].astype(o_ref.dtype)
    o_ref[:, c1:c1 + c2, :, :] = (
        c_ref[:, :, top:top + oh, left:left + ow].astype(o_ref.dtype)
    )


def _pick_batch_block(n, per_sample_bytes, budget_bytes):
    """Largest bt that divides n and keeps one grid step's blocks <= budget."""
    bt = max(1, min(n, budget_bytes // max(per_sample_bytes, 1)))
    while n % bt:
        bt -= 1
    return bt


def crop_and_copy(x, copy_tensor, *, vmem_block_budget_bytes=6 * 1024 * 1024):
    """x: (N, C1, H, W); copy_tensor: (N, C2, H2, W2) with H2 >= H, W2 >= H.
    Returns (N, C1 + C2, H, W) = concat(x, CenterCrop(H)(copy_tensor), axis=1)."""
    n, c1, h, w = x.shape
    n2, c2, h2, w2 = copy_tensor.shape
    assert n == n2, "batch dims must match"

    out_size = h  # CenterCrop(x.size()[2]) crops both spatial dims to H of x
    assert w == out_size, "x is expected to be square (H == W), as in the reference"
    # torchvision CenterCrop offsets (Python round == banker's rounding, matches torchvision)
    top = int(round((h2 - out_size) / 2.0))
    left = int(round((w2 - out_size) / 2.0))
    assert 0 <= top and top + out_size <= h2
    assert 0 <= left and left + out_size <= w2

    out_dtype = jnp.result_type(x.dtype, copy_tensor.dtype)

    # Batch-adaptive block size: fold as many samples per grid step as fit the
    # VMEM budget (BlockSpec double-buffers each operand, so keep the raw block
    # set comfortably below the per-generation scoped limits).
    per_sample_bytes = (
        c1 * h * w * x.dtype.itemsize
        + c2 * h2 * w2 * copy_tensor.dtype.itemsize
        + (c1 + c2) * out_size * out_size * out_dtype.itemsize
    )
    bt = _pick_batch_block(n, per_sample_bytes, vmem_block_budget_bytes)

    kernel = functools.partial(
        _crop_concat_kernel,
        c1=c1, c2=c2, top=top, left=left, oh=out_size, ow=out_size,
    )

    return pl.pallas_call(
        kernel,
        out_shape=jax.ShapeDtypeStruct((n, c1 + c2, out_size, out_size), out_dtype),
        grid=(n // bt,),
        in_specs=[
            # Last two block dims equal the full array dims, so the (8,128)
            # divisibility constraint does not apply.
            pl.BlockSpec((bt, c1, h, w), lambda b: (b, 0, 0, 0)),
            pl.BlockSpec((bt, c2, h2, w2), lambda b: (b, 0, 0, 0)),
        ],
        out_specs=pl.BlockSpec(
            (bt, c1 + c2, out_size, out_size), lambda b: (b, 0, 0, 0)
        ),
        compiler_params=pltpu.CompilerParams(
            dimension_semantics=("parallel",),
            vmem_limit_bytes=32 * 1024 * 1024,
        ),
    )(x, copy_tensor)


if __name__ == "__main__":
    key = jax.random.PRNGKey(0)
    kx, kc = jax.random.split(key)

    # Small shapes consistent with the U-Net skip-connection use:
    # decoder feature map x, and a larger encoder feature map to be cropped.
    x = jax.random.normal(kx, (2, 4, 16, 16), dtype=jnp.float32)
    copy_tensor = jax.random.normal(kc, (2, 4, 24, 24), dtype=jnp.float32)

    out = jax.block_until_ready(crop_and_copy(x, copy_tensor))

    # Reference check in plain JAX (CenterCrop + concat).
    h = x.shape[2]
    top = int(round((copy_tensor.shape[2] - h) / 2.0))
    left = int(round((copy_tensor.shape[3] - h) / 2.0))
    cc_ref = copy_tensor[:, :, top:top + h, left:left + h]
    ref = jnp.concatenate((x, cc_ref), axis=1)

    assert out.shape == (2, 8, 16, 16), out.shape
    assert jnp.array_equal(out, ref), "mismatch vs reference"
    print("KERNEL_OK")
</pallas_src>

<mosaic_0001>
module attributes {stable_mosaic.version = 11 : i64} {
  func.func @_crop_concat_kernel(%arg0: i32, %arg1: memref<2x4x16x16xf32, #tpu.memory_space<vmem>>, %arg2: memref<2x4x24x24xf32, #tpu.memory_space<vmem>>, %arg3: memref<2x8x16x16xf32, #tpu.memory_space<vmem>>) attributes {dimension_semantics = [#tpu.dimension_semantics<parallel>], iteration_bounds = array<i64: 1>, scalar_prefetch = 0 : i64, scratch_operands = 0 : i64, tpu.core_type = #tpu.core_type<tc>, window_params = [{transform_indices = @transform_0, window_bounds = array<i64: 2, 4, 16, 16>}, {transform_indices = @transform_1, window_bounds = array<i64: 2, 4, 24, 24>}, {transform_indices = @transform_2, window_bounds = array<i64: 2, 8, 16, 16>}]} {
    %c0 = arith.constant 0 : index
    %c0_0 = arith.constant 0 : index
    %c0_1 = arith.constant 0 : index
    %c0_2 = arith.constant 0 : index
    %0 = vector.load %arg1[%c0, %c0_0, %c0_1, %c0_2] : memref<2x4x16x16xf32, #tpu.memory_space<vmem>>, vector<2x4x16x16xf32>
    %c0_3 = arith.constant 0 : index
    %c0_4 = arith.constant 0 : index
    %c0_5 = arith.constant 0 : index
    %c0_6 = arith.constant 0 : index
    %1 = vector.load %arg3[%c0_3, %c0_4, %c0_5, %c0_6] : memref<2x8x16x16xf32, #tpu.memory_space<vmem>>, vector<2x4x16x16xf32>
    tpu.vector_store %arg3[%c0_3, %c0_4, %c0_5, %c0_6], %0 {strides = array<i32>} : memref<2x8x16x16xf32, #tpu.memory_space<vmem>>, vector<2x4x16x16xf32>,
    %c0_7 = arith.constant 0 : index
    %c0_8 = arith.constant 0 : index
    %c4 = arith.constant 4 : index
    %c4_9 = arith.constant 4 : index
    %2 = vector.load %arg2[%c0_7, %c0_8, %c4, %c4_9] : memref<2x4x24x24xf32, #tpu.memory_space<vmem>>, vector<2x4x16x16xf32>
    %c0_10 = arith.constant 0 : index
    %c4_11 = arith.constant 4 : index
    %c0_12 = arith.constant 0 : index
    %c0_13 = arith.constant 0 : index
    %3 = vector.load %arg3[%c0_10, %c4_11, %c0_12, %c0_13] : memref<2x8x16x16xf32, #tpu.memory_space<vmem>>, vector<2x4x16x16xf32>
    tpu.vector_store %arg3[%c0_10, %c4_11, %c0_12, %c0_13], %2 {strides = array<i32>} : memref<2x8x16x16xf32, #tpu.memory_space<vmem>>, vector<2x4x16x16xf32>,
    return
  }
  func.func @transform_0(%arg0: i32) -> (i32, i32, i32, i32) {
    %c0_i32 = arith.constant 0 : i32
    %c0_i32_0 = arith.constant 0 : i32
    %c0_i32_1 = arith.constant 0 : i32
    %c0_i32_2 = arith.constant 0 : i32
    return %arg0, %c0_i32, %c0_i32_0, %c0_i32_1 : i32, i32, i32, i32
  }
  func.func @transform_1(%arg0: i32) -> (i32, i32, i32, i32) {
    %c0_i32 = arith.constant 0 : i32
    %c0_i32_0 = arith.constant 0 : i32
    %c0_i32_1 = arith.constant 0 : i32
    %c0_i32_2 = arith.constant 0 : i32
    return %arg0, %c0_i32, %c0_i32_0, %c0_i32_1 : i32, i32, i32, i32
  }
  func.func @transform_2(%arg0: i32) -> (i32, i32, i32, i32) {
    %c0_i32 = arith.constant 0 : i32
    %c0_i32_0 = arith.constant 0 : i32
    %c0_i32_1 = arith.constant 0 : i32
    %c0_i32_2 = arith.constant 0 : i32
    return %arg0, %c0_i32, %c0_i32_0, %c0_i32_1 : i32, i32, i32, i32
  }
}

</mosaic_0001>

<llo_original>
// kernel: tpu_custom_call.1
$region0: #{tpu_custom_call.1}
  #allocation0 [shape = 'u32[]', space=smem, size = 0x4, offset = 0x4, fixed_abs, tag = 'smem constant byte address 0x4 - core index']
  #allocation1 [shape = 'u32[72,128]{1,0:T(1,128)}', space=vmem, size = 0x9000, scoped, tag = 'internal scratch']
  %s0 = inlined_call_operand.hbm [shape: f32[2,4,16,16], index: 0, kind: input, shape index: {}]
  %s1 = inlined_call_operand.hbm [shape: f32[2,4,24,24], index: 1, kind: input, shape index: {}]
  %s2 = inlined_call_operand.hbm [shape: f32[2,8,16,16], index: 2, kind: output, shape index: {}]
  %s3 = sld [smem:[#allocation0]]
  $region26: #{tpu_custom_call.1} parent=0
    _
  %s5 = ssub.s32 1, %s3
  %s6 = scalar_select 0, %s5, %s3
  $region1: #{tpu_custom_call.1} parent=0
    #allocation2 [shape = 'u8[65536]{0}', space=vmem, size = 0x10000, scoped, tag = 'input window, operand 0, single buffered']
    #allocation3 [shape = 's32[1]{0}', space=sflag, size = 0x4, scoped, tag = 'scoped memory for tpu_custom_call.1']
    #allocation4 [shape = 's32[1]{0}', space=sflag, size = 0x4, scoped, tag = 'scoped memory for tpu_custom_call.1']
    #allocation5 [shape = 'u8[98304]{0}', space=vmem, size = 0x18000, scoped, tag = 'input window, operand 1, single buffered']
    #allocation6 [shape = 's32[1]{0}', space=sflag, size = 0x4, scoped, tag = 'scoped memory for tpu_custom_call.1']
    #allocation7 [shape = 'u8[131072]{0}', space=vmem, size = 0x20000, scoped, tag = 'output window, operand 0, single buffered']
    %7 = vsyncpa [#allocation3], 0
    %8 = vsyncpa [#allocation6], 0
    %9 = vsyncpa [#allocation4], 0
    // Predicated region
    $region2: #{tpu_custom_call.1} parent=1 // pred_check
      _
    $region3: #{tpu_custom_call.1} parent=1 // pred_check_branch
      %11 = sbr.rel (0) target = $region5
    $region4: #{tpu_custom_call.1} parent=1 // pred_region
      %13 = vsyncadd [#allocation3], 0
      %s14 = sshll.u32 %s0, 4
      %s15 = int_to_ptr.hbm [resolvable:$true] %s14
      %s16 = sshll.u32 [#allocation2], 4
      %s17 = int_to_ptr.vmem [resolvable:$true] %s16
      %22 = dma.hbm_to_vmem [thread:$0]  %s15, 2048, %s17, [#allocation3], 128, 128, 8
    $region5: #{tpu_custom_call.1} parent=1 // pred_fallthru
      _
    // Predicated region
    $region6: #{tpu_custom_call.1} parent=1 // pred_check
      _
    $region7: #{tpu_custom_call.1} parent=1 // pred_check_branch
      %24 = sbr.rel (0) target = $region9
    $region8: #{tpu_custom_call.1} parent=1 // pred_region
      %26 = vsyncadd [#allocation6], 0
      %s27 = sshll.u32 %s1, 4
      %s28 = int_to_ptr.hbm [resolvable:$true] %s27
      %s29 = sshll.u32 [#allocation5], 4
      %s30 = int_to_ptr.vmem [resolvable:$true] %s29
      %35 = dma.hbm_to_vmem [thread:$0]  %s28, 3072, %s30, [#allocation6], 128, 128, 8
    $region9: #{tpu_custom_call.1} parent=1 // pred_fallthru
      _
    // Predicated region
    $region10: #{tpu_custom_call.1} parent=1 // pred_check
      _
    $region11: #{tpu_custom_call.1} parent=1 // pred_check_branch
      %37 = sbr.rel (0) target = $region13
    $region12: #{tpu_custom_call.1} parent=1 // pred_region
      %39 = dma.done [#allocation3], 2048
    $region13: #{tpu_custom_call.1} parent=1 // pred_fallthru
      _
    // Predicated region
    $region14: #{tpu_custom_call.1} parent=1 // pred_check
      _
    $region15: #{tpu_custom_call.1} parent=1 // pred_check_branch
      %41 = sbr.rel (0) target = $region17
    $region16: #{tpu_custom_call.1} parent=1 // pred_region
      %43 = dma.done [#allocation6], 3072
    $region17: #{tpu_custom_call.1} parent=1 // pred_fallthru
      _
    %v44 = vld [vmem:[#allocation2] sm:$0xff]
    %v45 = vld [vmem:[#allocation2 + $0x8] sm:$0xff]
    %v46 = vld [vmem:[#allocation2 + $0x10] sm:$0xff]
    %v47 = vld [vmem:[#allocation2 + $0x18] sm:$0xff]
    %v48 = vld [vmem:[#allocation2 + $0x20] sm:$0xff]
    %v49 = vld [vmem:[#allocation2 + $0x28] sm:$0xff]
    %v50 = vld [vmem:[#allocation2 + $0x30] sm:$0xff]
    %v51 = vld [vmem:[#allocation2 + $0x38] sm:$0xff]
    %v52 = vld [vmem:[#allocation2 + $0x40] sm:$0xff]
    %v53 = vld [vmem:[#allocation2 + $0x48] sm:$0xff]
    %v54 = vld [vmem:[#allocation2 + $0x50] sm:$0xff]
    %v55 = vld [vmem:[#allocation2 + $0x58] sm:$0xff]
    %v56 = vld [vmem:[#allocation2 + $0x60] sm:$0xff]
    %v57 = vld [vmem:[#allocation2 + $0x68] sm:$0xff]
    %v58 = vld [vmem:[#allocation2 + $0x70] sm:$0xff]
    %v59 = vld [vmem:[#allocation2 + $0x78] sm:$0xff]
    %vm60 = vcmask 130048
    %61 = vst.msk [vmem:[#allocation7] sm:$0xff] %vm60, %v44
    %62 = vst.msk [vmem:[#allocation7 + $0x8] sm:$0xff] %vm60, %v45
    %63 = vst.msk [vmem:[#allocation7 + $0x10] sm:$0xff] %vm60, %v46
    %64 = vst.msk [vmem:[#allocation7 + $0x18] sm:$0xff] %vm60, %v47
    %65 = vst.msk [vmem:[#allocation7 + $0x20] sm:$0xff] %vm60, %v48
    %66 = vst.msk [vmem:[#allocation7 + $0x28] sm:$0xff] %vm60, %v49
    %67 = vst.msk [vmem:[#allocation7 + $0x30] sm:$0xff] %vm60, %v50
    %68 = vst.msk [vmem:[#allocation7 + $0x38] sm:$0xff] %vm60, %v51
    %69 = vst.msk [vmem:[#allocation7 + $0x80] sm:$0xff] %vm60, %v52
    %70 = vst.msk [vmem:[#allocation7 + $0x88] sm:$0xff] %vm60, %v53
    %71 = vst.msk [vmem:[#allocation7 + $0x90] sm:$0xff] %vm60, %v54
    %72 = vst.msk [vmem:[#allocation7 + $0x98] sm:$0xff] %vm60, %v55
    %73 = vst.msk [vmem:[#allocation7 + $0xa0] sm:$0xff] %vm60, %v56
    %74 = vst.msk [vmem:[#allocation7 + $0xa8] sm:$0xff] %vm60, %v57
    %75 = vst.msk [vmem:[#allocation7 + $0xb0] sm:$0xff] %vm60, %v58
    %76 = vst.msk [vmem:[#allocation7 + $0xb8] sm:$0xff] %vm60, %v59
    %v77 = vld [vmem:[#allocation5 + $0x4] sm:$0xff]
    %v78 = vld [vmem:[#allocation5 + $0xc] sm:$0xff]
    %v79 = vld [vmem:[#allocation5 + $0x1c] sm:$0xff]
    %v80 = vld [vmem:[#allocation5 + $0x24] sm:$0xff]
    %v81 = vld [vmem:[#allocation5 + $0x34] sm:$0xff]
    %v82 = vld [vmem:[#allocation5 + $0x3c] sm:$0xff]
    %v83 = vld [vmem:[#allocation5 + $0x4c] sm:$0xff]
    %v84 = vld [vmem:[#allocation5 + $0x54] sm:$0xff]
    %v85 = vld [vmem:[#allocation5 + $0x64] sm:$0xff]
    %v86 = vld [vmem:[#allocation5 + $0x6c] sm:$0xff]
    %v87 = vld [vmem:[#allocation5 + $0x7c] sm:$0xff]
    %v88 = vld [vmem:[#allocation5 + $0x84] sm:$0xff]
    %v89 = vld [vmem:[#allocation5 + $0x94] sm:$0xff]
    %v90 = vld [vmem:[#allocation5 + $0x9c] sm:$0xff]
    %v91 = vld [vmem:[#allocation5 + $0xac] sm:$0xff]
    %v92 = vld [vmem:[#allocation5 + $0xb4] sm:$0xff]
    %109 = vrot.lane.b32.xlu0 %v77, 124
    %v110 = vpop.permute.xlu0 %109
    %111 = vrot.lane.b32.xlu0 %v78, 124
    %v112 = vpop.permute.xlu0 %111
    %113 = vrot.lane.b32.xlu0 %v79, 124
    %v114 = vpop.permute.xlu0 %113
    %115 = vrot.lane.b32.xlu0 %v80, 124
    %v116 = vpop.permute.xlu0 %115
    %117 = vrot.lane.b32.xlu0 %v81, 124
    %v118 = vpop.permute.xlu0 %117
    %119 = vrot.lane.b32.xlu0 %v82, 124
    %v120 = vpop.permute.xlu0 %119
    %121 = vrot.lane.b32.xlu0 %v83, 124
    %v122 = vpop.permute.xlu0 %121
    %123 = vrot.lane.b32.xlu0 %v84, 124
    %v124 = vpop.permute.xlu0 %123
    %125 = vrot.lane.b32.xlu0 %v85, 124
    %v126 = vpop.permute.xlu0 %125
    %127 = vrot.lane.b32.xlu0 %v86, 124
    %v128 = vpop.permute.xlu0 %127
    %129 = vrot.lane.b32.xlu0 %v87, 124
    %v130 = vpop.permute.xlu0 %129
    %131 = vrot.lane.b32.xlu0 %v88, 124
    %v132 = vpop.permute.xlu0 %131
    %133 = vrot.lane.b32.xlu0 %v89, 124
    %v134 = vpop.permute.xlu0 %133
    %135 = vrot.lane.b32.xlu0 %v90, 124
    %v136 = vpop.permute.xlu0 %135
    %137 = vrot.lane.b32.xlu0 %v91, 124
    %v138 = vpop.permute.xlu0 %137
    %139 = vrot.lane.b32.xlu0 %v92, 124
    %v140 = vpop.permute.xlu0 %139
    %s157 = scalar_lea.vmem [#allocation7], 64
    %158 = vst.msk [vmem:[%s157] sm:$0xff] %vm60, %v110
    %159 = vst.msk [vmem:[%s157 + $0x8] sm:$0xff] %vm60, %v112
    %160 = vst.msk [vmem:[%s157 + $0x10] sm:$0xff] %vm60, %v114
    %161 = vst.msk [vmem:[%s157 + $0x18] sm:$0xff] %vm60, %v116
    %162 = vst.msk [vmem:[%s157 + $0x20] sm:$0xff] %vm60, %v118
    %163 = vst.msk [vmem:[%s157 + $0x28] sm:$0xff] %vm60, %v120
    %164 = vst.msk [vmem:[%s157 + $0x30] sm:$0xff] %vm60, %v122
    %165 = vst.msk [vmem:[%s157 + $0x38] sm:$0xff] %vm60, %v124
    %166 = vst.msk [vmem:[%s157 + $0x80] sm:$0xff] %vm60, %v126
    %167 = vst.msk [vmem:[%s157 + $0x88] sm:$0xff] %vm60, %v128
    %168 = vst.msk [vmem:[%s157 + $0x90] sm:$0xff] %vm60, %v130
    %169 = vst.msk [vmem:[%s157 + $0x98] sm:$0xff] %vm60, %v132
    %170 = vst.msk [vmem:[%s157 + $0xa0] sm:$0xff] %vm60, %v134
    %171 = vst.msk [vmem:[%s157 + $0xa8] sm:$0xff] %vm60, %v136
    %172 = vst.msk [vmem:[%s157 + $0xb0] sm:$0xff] %vm60, %v138
    %173 = vst.msk [vmem:[%s157 + $0xb8] sm:$0xff] %vm60, %v140
    // Predicated region
    $region18: #{tpu_custom_call.1} parent=1 // pred_check
      _
    $region19: #{tpu_custom_call.1} parent=1 // pred_check_branch
      %175 = sbr.rel (0) target = $region21
    $region20: #{tpu_custom_call.1} parent=1 // pred_region
      %177 = vsyncadd [#allocation4], 0
      %s178 = sshll.u32 [#allocation7], 4
      %s179 = int_to_ptr.vmem [resolvable:$true] %s178
      %s180 = sshll.u32 %s2, 4
      %s181 = int_to_ptr.hbm [resolvable:$true] %s180
      %186 = dma.vmem_to_hbm [thread:$0]  %s179, 4096, %s181, [#allocation4], 128, 128, 8
    $region21: #{tpu_custom_call.1} parent=1 // pred_fallthru
      _
    // Predicated region
    $region22: #{tpu_custom_call.1} parent=1 // pred_check
      _
    $region23: #{tpu_custom_call.1} parent=1 // pred_check_branch
      %188 = sbr.rel (0) target = $region25
    $region24: #{tpu_custom_call.1} parent=1 // pred_region
      %190 = dma.done [#allocation4], 4096
    $region25: #{tpu_custom_call.1} parent=1 // pred_fallthru
      _
    %191 = vsyncpa [#allocation3], 1
    %192 = vsyncpa [#allocation6], 1
    %193 = vsyncpa [#allocation4], 1

</llo_original>
